<compile_context>
chip_gen: v7x
topology: tpu7x:2x2x1
jax: 0.10.0
libtpu: 0.0.40
codegen_flags: <defaults>
</compile_context>

<pallas_src>
import jax
import jax.numpy as jnp
from jax.experimental import pallas as pl
from jax.experimental.pallas import tpu as pltpu

ACTION_LOW = -0.15
ACTION_HIGH = 0.15
STATE_DIM = 13           # len(STATE_FEATURES)
HIDDEN = 256

SINGLE_TILE_MAX = 256    # batches up to this run as a single grid step
MAX_TILE = 1024          # batch-tile cap for larger batches (amortizes per-step overhead)


def _round_up(x, m):
    return (x + m - 1) // m * m


def actor_kernel(s_ref, w1_ref, b1_ref, w2_ref, b2_ref, w3_ref, b3_ref, o_ref):
    # Layer 1 (MXU, bf16 single-pass): (tm, D) @ (D, H) + b1, ReLU.
    h = jnp.dot(s_ref[...].astype(jnp.bfloat16), w1_ref[...],
                preferred_element_type=jnp.float32)
    h = jnp.maximum(h + b1_ref[...], 0.0)
    # Layer 2 (MXU, bf16 single-pass): (tm, H) @ (H, H) + b2, ReLU.
    h = jnp.dot(h.astype(jnp.bfloat16), w2_ref[...],
                preferred_element_type=jnp.float32)
    h = jnp.maximum(h + b2_ref[...], 0.0)
    # Layer 3 (H -> 1): an N=1 matmul wastes the MXU, so do it on the VPU.
    # Pre-sum the two 128-lane halves on the VPU so the XLU cross-lane reduce
    # only has to collapse 128 lanes (halves XLU work on v6e/v7x).
    hw = h * w3_ref[...]                                    # (tm, H)    VPU
    hw = hw[:, : HIDDEN // 2] + hw[:, HIDDEN // 2:]         # (tm, 128)  VPU
    y = jnp.sum(hw, axis=-1, keepdims=True)                 # (tm, 1)    XLU
    y = jnp.tanh(y + b3_ref[0])                             # EUP; b3 is an SMEM scalar
    # Action rescale: * (HIGH-LOW)/2 + (HIGH+LOW)/2
    scale = (ACTION_HIGH - ACTION_LOW) * 0.5
    shift = (ACTION_HIGH + ACTION_LOW) * 0.5
    o_ref[...] = (y * scale + shift).astype(o_ref.dtype)


def actor_forward(s, params):
    """s: (B, STATE_DIM) float32 -> (B, 1) float32."""
    B, D = s.shape
    assert D == STATE_DIM
    w1, b1, w2, b2, w3, b3 = params

    # bf16 copies of the matmul weights (single-pass MXU).  No-op if the caller
    # already keeps bf16 weights resident.
    w1 = w1.astype(jnp.bfloat16)
    w2 = w2.astype(jnp.bfloat16)

    rows = B
    if B <= SINGLE_TILE_MAX:
        # Single grid step; fixed launch/DMA cost dominates here anyway.
        ntiles = 1
        tm = _round_up(max(B, 8), 8)
        if tm > B:
            # Tiny / ragged batch: cheap pad so the one block never exceeds the array.
            s = jnp.pad(s, ((0, tm - B), (0, 0)))
            rows = tm
    else:
        # Large batches: big tiles, even grid length so v7x's two TensorCores get
        # equal step counts; no HBM padding copy (partial last block is masked by
        # Pallas, and rows are independent so padded reads cannot leak into outputs).
        ntiles = pl.cdiv(B, MAX_TILE)
        ntiles += ntiles % 2
        tm = _round_up(pl.cdiv(B, ntiles), 8)

    full = lambda i: (0, 0)  # weights / biases: same full block every grid step

    out = pl.pallas_call(
        actor_kernel,
        out_shape=jax.ShapeDtypeStruct((rows, 1), jnp.float32),
        grid_spec=pltpu.PrefetchScalarGridSpec(
            num_scalar_prefetch=0,
            grid=(ntiles,),
            in_specs=[
                pl.BlockSpec((tm, D), lambda i: (i, 0)),              # s tile
                pl.BlockSpec((D, HIDDEN), full),                      # w1 (bf16)
                pl.BlockSpec((1, HIDDEN), full),                      # b1
                pl.BlockSpec((HIDDEN, HIDDEN), full),                 # w2 (bf16)
                pl.BlockSpec((1, HIDDEN), full),                      # b2
                pl.BlockSpec((1, HIDDEN), full),                      # w3 (row vector)
                pl.BlockSpec(memory_space=pltpu.MemorySpace.SMEM),    # b3 scalar
            ],
            out_specs=pl.BlockSpec((tm, 1), lambda i: (i, 0)),
        ),
        compiler_params=pltpu.CompilerParams(
            dimension_semantics=("parallel",),
        ),
    )(s, w1, b1, w2, b2, w3, b3)

    return out[:B] if rows != B else out


def init_actor_params(key):
    """Deterministic init mirroring nn.Linear default: U(-1/sqrt(fan_in), 1/sqrt(fan_in)).
    w1, w2 stored as (in_features, out_features); w3 stored as a (1, HIDDEN) row."""
    ks = jax.random.split(key, 6)

    def uni(k, shape, fan_in):
        bound = 1.0 / jnp.sqrt(jnp.float32(fan_in))
        return jax.random.uniform(k, shape, jnp.float32, -bound, bound)

    w1 = uni(ks[0], (STATE_DIM, HIDDEN), STATE_DIM)
    b1 = uni(ks[1], (1, HIDDEN), STATE_DIM)
    w2 = uni(ks[2], (HIDDEN, HIDDEN), HIDDEN)
    b2 = uni(ks[3], (1, HIDDEN), HIDDEN)
    w3 = uni(ks[4], (1, HIDDEN), HIDDEN)     # row-vector layout for VPU layer 3
    b3 = uni(ks[5], (1,), HIDDEN)            # scalar bias (lives in SMEM in-kernel)
    return (w1, b1, w2, b2, w3, b3)


def actor_reference(s, params):
    """Pure-JAX f32 reference (matches the PyTorch module's math)."""
    w1, b1, w2, b2, w3, b3 = params
    h = jnp.maximum(s @ w1 + b1, 0.0)
    h = jnp.maximum(h @ w2 + b2, 0.0)
    y = jnp.tanh(jnp.dot(h, w3.T, precision=jax.lax.Precision.HIGHEST) + b3)
    return y * (ACTION_HIGH - ACTION_LOW) / 2.0 + (ACTION_HIGH + ACTION_LOW) / 2.0


def actor_reference_matched(s, params):
    """Reference using the same bf16-operand / f32-accumulate recipe as the kernel."""
    w1, b1, w2, b2, w3, b3 = params
    h = jnp.dot(s.astype(jnp.bfloat16), w1.astype(jnp.bfloat16),
                preferred_element_type=jnp.float32)
    h = jnp.maximum(h + b1, 0.0)
    h = jnp.dot(h.astype(jnp.bfloat16), w2.astype(jnp.bfloat16),
                preferred_element_type=jnp.float32)
    h = jnp.maximum(h + b2, 0.0)
    y = jnp.tanh(jnp.sum(h * w3, axis=-1, keepdims=True) + b3)
    return y * (ACTION_HIGH - ACTION_LOW) / 2.0 + (ACTION_HIGH + ACTION_LOW) / 2.0


if __name__ == "__main__":
    key = jax.random.PRNGKey(0)
    k_params, k_data = jax.random.split(key)
    params = init_actor_params(k_params)

    # Primary check: DT_BATCH = 64 -> single grid step (tm = 64, grid = (1,)).
    B = 64
    s = jax.random.normal(k_data, (B, STATE_DIM), jnp.float32)
    out = jax.block_until_ready(actor_forward(s, params))
    assert out.shape == (B, 1)
    assert jnp.allclose(out, actor_reference_matched(s, params), atol=5e-4), \
        "mismatch vs matched-precision reference (B=64)"
    assert jnp.allclose(out, actor_reference(s, params), atol=3e-3), \
        "mismatch vs f32 reference (B=64)"

    # Exercise the ragged single-tile path and the even-length multi-tile grid path.
    for B2 in (70, 600):
        s2 = jax.random.normal(jax.random.PRNGKey(B2), (B2, STATE_DIM), jnp.float32)
        out2 = jax.block_until_ready(actor_forward(s2, params))
        assert out2.shape == (B2, 1)
        assert jnp.allclose(out2, actor_reference(s2, params), atol=3e-3), \
            f"mismatch vs f32 reference (B={B2})"

    print("KERNEL_OK")
</pallas_src>

<mosaic_0001>
module attributes {stable_mosaic.version = 11 : i64} {
  func.func @actor_kernel(%arg0: i32, %arg1: memref<64x13xf32, #tpu.memory_space<vmem>>, %arg2: memref<13x256xbf16, #tpu.memory_space<vmem>>, %arg3: memref<1x256xf32, #tpu.memory_space<vmem>>, %arg4: memref<256x256xbf16, #tpu.memory_space<vmem>>, %arg5: memref<1x256xf32, #tpu.memory_space<vmem>>, %arg6: memref<1x256xf32, #tpu.memory_space<vmem>>, %arg7: memref<1xf32, #tpu.memory_space<smem>>, %arg8: memref<64x1xf32, #tpu.memory_space<vmem>>) attributes {dimension_semantics = [#tpu.dimension_semantics<parallel>], iteration_bounds = array<i64: 1>, scalar_prefetch = 0 : i64, scratch_operands = 0 : i64, tpu.core_type = #tpu.core_type<tc>, window_params = [{transform_indices = @transform_0, window_bounds = array<i64: 64, 13>}, {pipeline_mode = #tpu.pipeline_mode<synchronous>, transform_indices = @transform_1, window_bounds = array<i64: 13, 256>}, {pipeline_mode = #tpu.pipeline_mode<synchronous>, transform_indices = @transform_2, window_bounds = array<i64: 1, 256>}, {pipeline_mode = #tpu.pipeline_mode<synchronous>, transform_indices = @transform_3, window_bounds = array<i64: 256, 256>}, {pipeline_mode = #tpu.pipeline_mode<synchronous>, transform_indices = @transform_4, window_bounds = array<i64: 1, 256>}, {pipeline_mode = #tpu.pipeline_mode<synchronous>, transform_indices = @transform_5, window_bounds = array<i64: 1, 256>}, {transform_indices = @transform_6, window_bounds = array<i64: 1>}, {transform_indices = @transform_7, window_bounds = array<i64: 64, 1>}]} {
    %c0 = arith.constant 0 : index
    %c0_0 = arith.constant 0 : index
    %0 = vector.load %arg1[%c0, %c0_0] : memref<64x13xf32, #tpu.memory_space<vmem>>, vector<64x13xf32>
    %1 = arith.truncf %0 : vector<64x13xf32> to vector<64x13xbf16>
    %c0_1 = arith.constant 0 : index
    %c0_2 = arith.constant 0 : index
    %2 = vector.load %arg2[%c0_1, %c0_2] : memref<13x256xbf16, #tpu.memory_space<vmem>>, vector<13x256xbf16>
    %cst = arith.constant dense<0.000000e+00> : vector<64x256xf32>
    %3 = tpu.matmul %1, %2, %cst {dimension_numbers = #tpu.dot_dimension_numbers<[1], [0], [0], [1], [0, 0, 1, 1], [], []>} : vector<64x13xbf16>, vector<13x256xbf16>, vector<64x256xf32> -> vector<64x256xf32>
    %c0_3 = arith.constant 0 : index
    %c0_4 = arith.constant 0 : index
    %4 = vector.load %arg3[%c0_3, %c0_4] : memref<1x256xf32, #tpu.memory_space<vmem>>, vector<1x256xf32>
    %5 = vector.broadcast %4 : vector<1x256xf32> to vector<64x256xf32>
    %6 = arith.addf %3, %5 : vector<64x256xf32>
    %cst_5 = arith.constant 0.000000e+00 : f32
    %7 = vector.broadcast %cst_5 : f32 to vector<64x256xf32>
    %8 = arith.maximumf %6, %7 : vector<64x256xf32>
    %9 = arith.truncf %8 : vector<64x256xf32> to vector<64x256xbf16>
    %c0_6 = arith.constant 0 : index
    %c0_7 = arith.constant 0 : index
    %10 = vector.load %arg4[%c0_6, %c0_7] : memref<256x256xbf16, #tpu.memory_space<vmem>>, vector<256x256xbf16>
    %cst_8 = arith.constant dense<0.000000e+00> : vector<64x256xf32>
    %11 = tpu.matmul %9, %10, %cst_8 {dimension_numbers = #tpu.dot_dimension_numbers<[1], [0], [0], [1], [0, 0, 1, 1], [], []>} : vector<64x256xbf16>, vector<256x256xbf16>, vector<64x256xf32> -> vector<64x256xf32>
    %c0_9 = arith.constant 0 : index
    %c0_10 = arith.constant 0 : index
    %12 = vector.load %arg5[%c0_9, %c0_10] : memref<1x256xf32, #tpu.memory_space<vmem>>, vector<1x256xf32>
    %13 = vector.broadcast %12 : vector<1x256xf32> to vector<64x256xf32>
    %14 = arith.addf %11, %13 : vector<64x256xf32>
    %cst_11 = arith.constant 0.000000e+00 : f32
    %15 = vector.broadcast %cst_11 : f32 to vector<64x256xf32>
    %16 = arith.maximumf %14, %15 : vector<64x256xf32>
    %c0_12 = arith.constant 0 : index
    %c0_13 = arith.constant 0 : index
    %17 = vector.load %arg6[%c0_12, %c0_13] : memref<1x256xf32, #tpu.memory_space<vmem>>, vector<1x256xf32>
    %18 = vector.broadcast %17 : vector<1x256xf32> to vector<64x256xf32>
    %19 = arith.mulf %16, %18 : vector<64x256xf32>
    %20 = vector.extract_strided_slice %19 {offsets = [0, 0], sizes = [64, 128], strides = [1, 1]} : vector<64x256xf32> to vector<64x128xf32>
    %21 = vector.extract_strided_slice %19 {offsets = [0, 128], sizes = [64, 128], strides = [1, 1]} : vector<64x256xf32> to vector<64x128xf32>
    %22 = arith.addf %20, %21 : vector<64x128xf32>
    %cst_14 = arith.constant dense<0.000000e+00> : vector<64xf32>
    %23 = vector.multi_reduction <add>, %22, %cst_14 [1] : vector<64x128xf32> to vector<64xf32>
    %24 = vector.shape_cast %23 : vector<64xf32> to vector<64x1xf32>
    %c0_15 = arith.constant 0 : index
    %25 = memref.load %arg7[%c0_15] : memref<1xf32, #tpu.memory_space<smem>>
    %26 = vector.broadcast %25 : f32 to vector<64x1xf32>
    %27 = arith.addf %24, %26 : vector<64x1xf32>
    %28 = math.tanh %27 : vector<64x1xf32>
    %cst_16 = arith.constant 1.500000e-01 : f32
    %29 = vector.broadcast %cst_16 : f32 to vector<64x1xf32>
    %30 = arith.mulf %28, %29 : vector<64x1xf32>
    %cst_17 = arith.constant 0.000000e+00 : f32
    %31 = vector.broadcast %cst_17 : f32 to vector<64x1xf32>
    %32 = arith.addf %30, %31 : vector<64x1xf32>
    %c0_18 = arith.constant 0 : index
    %c0_19 = arith.constant 0 : index
    %33 = vector.load %arg8[%c0_18, %c0_19] : memref<64x1xf32, #tpu.memory_space<vmem>>, vector<64x1xf32>
    tpu.vector_store %arg8[%c0_18, %c0_19], %32 {strides = array<i32>} : memref<64x1xf32, #tpu.memory_space<vmem>>, vector<64x1xf32>,
    return
  }
  func.func @transform_0(%arg0: i32) -> (i32, i32) {
    %c0_i32 = arith.constant 0 : i32
    %c0_i32_0 = arith.constant 0 : i32
    return %arg0, %c0_i32 : i32, i32
  }
  func.func @transform_1(%arg0: i32) -> (i32, i32) {
    %c0_i32 = arith.constant 0 : i32
    %c0_i32_0 = arith.constant 0 : i32
    %c0_i32_1 = arith.constant 0 : i32
    return %c0_i32, %c0_i32_0 : i32, i32
  }
  func.func @transform_2(%arg0: i32) -> (i32, i32) {
    %c0_i32 = arith.constant 0 : i32
    %c0_i32_0 = arith.constant 0 : i32
    %c0_i32_1 = arith.constant 0 : i32
    return %c0_i32, %c0_i32_0 : i32, i32
  }
  func.func @transform_3(%arg0: i32) -> (i32, i32) {
    %c0_i32 = arith.constant 0 : i32
    %c0_i32_0 = arith.constant 0 : i32
    %c0_i32_1 = arith.constant 0 : i32
    return %c0_i32, %c0_i32_0 : i32, i32
  }
  func.func @transform_4(%arg0: i32) -> (i32, i32) {
    %c0_i32 = arith.constant 0 : i32
    %c0_i32_0 = arith.constant 0 : i32
    %c0_i32_1 = arith.constant 0 : i32
    return %c0_i32, %c0_i32_0 : i32, i32
  }
  func.func @transform_5(%arg0: i32) -> (i32, i32) {
    %c0_i32 = arith.constant 0 : i32
    %c0_i32_0 = arith.constant 0 : i32
    %c0_i32_1 = arith.constant 0 : i32
    return %c0_i32, %c0_i32_0 : i32, i32
  }
  func.func @transform_6(%arg0: i32) -> i32 {
    %c0_i32 = arith.constant 0 : i32
    %c0_i32_0 = arith.constant 0 : i32
    return %c0_i32 : i32
  }
  func.func @transform_7(%arg0: i32) -> (i32, i32) {
    %c0_i32 = arith.constant 0 : i32
    %c0_i32_0 = arith.constant 0 : i32
    return %arg0, %c0_i32 : i32, i32
  }
}

</mosaic_0001>

<llo_original>
// kernel: tpu_custom_call.1
$region0: #{tpu_custom_call.1}
  #allocation0 [shape = 'u32[]', space=smem, size = 0x4, offset = 0x4, fixed_abs, tag = 'smem constant byte address 0x4 - core index']
  #allocation1 [shape = 'u32[144,128]{1,0:T(1,128)}', space=vmem, size = 0x12000, scoped, tag = 'internal scratch']
  #allocation2 [shape = 'f32[1]{0:T(128)S(6)}', space=smem, size = 0x200, scoped, tag = 'scoped memory for tpu_custom_call.1']
  %s0 = inlined_call_operand.vmem [shape: f32[64,13], index: 0, kind: input, shape index: {}]
  %s1 = inlined_call_operand.vmem [shape: bf16[13,256], index: 1, kind: input, shape index: {}]
  %s2 = inlined_call_operand.vmem [shape: f32[1,256], index: 2, kind: input, shape index: {}]
  %s3 = inlined_call_operand.hbm [shape: bf16[256,256], index: 3, kind: input, shape index: {}]
  %s4 = inlined_call_operand.vmem [shape: f32[1,256], index: 4, kind: input, shape index: {}]
  %s5 = inlined_call_operand.vmem [shape: f32[1,256], index: 5, kind: input, shape index: {}]
  %s6 = inlined_call_operand.<no memory space> [shape: f32[1], index: 6, kind: input, shape index: {}]
  %s7 = inlined_call_operand.vmem [shape: f32[64,1], index: 7, kind: output, shape index: {}]
  %s8 = sld [smem:[#allocation0]]
  $region42: #{tpu_custom_call.1} parent=0
    _
  %s10 = ssub.s32 1, %s8
  %s11 = scalar_select 0, %s10, %s8
  %12 = sst [smem:[#allocation2]] %s6
  $region1: #{tpu_custom_call.1} parent=0
    #allocation3 [shape = 'u8[131072]{0}', space=vmem, size = 0x20000, scoped, tag = 'input window, operand 3, single buffered']
    #allocation4 [shape = 's32[1]{0}', space=sflag, size = 0x4, scoped, tag = 'scoped memory for tpu_custom_call.1']
    %13 = vsyncpa [#allocation4], 0
    // Predicated region
    $region2: #{tpu_custom_call.1} parent=1 // pred_check
      _
    $region3: #{tpu_custom_call.1} parent=1 // pred_check_branch
      %15 = sbr.rel (0) target = $region5
    $region4: #{tpu_custom_call.1} parent=1 // pred_region
      _
    $region5: #{tpu_custom_call.1} parent=1 // pred_fallthru
      _
    // Predicated region
    $region6: #{tpu_custom_call.1} parent=1 // pred_check
      _
    $region7: #{tpu_custom_call.1} parent=1 // pred_check_branch
      %17 = sbr.rel (0) target = $region9
    $region8: #{tpu_custom_call.1} parent=1 // pred_region
      _
    $region9: #{tpu_custom_call.1} parent=1 // pred_fallthru
      _
    // Predicated region
    $region10: #{tpu_custom_call.1} parent=1 // pred_check
      _
    $region11: #{tpu_custom_call.1} parent=1 // pred_check_branch
      %19 = sbr.rel (0) target = $region13
    $region12: #{tpu_custom_call.1} parent=1 // pred_region
      _
    $region13: #{tpu_custom_call.1} parent=1 // pred_fallthru
      _
    // Predicated region
    $region14: #{tpu_custom_call.1} parent=1 // pred_check
      _
    $region15: #{tpu_custom_call.1} parent=1 // pred_check_branch
      %21 = sbr.rel (0) target = $region17
    $region16: #{tpu_custom_call.1} parent=1 // pred_region
      %s23 = ssub.s32 4096, 4096
      %24 = vsyncadd [#allocation4], %s23
      %s25 = sshll.u32 [#allocation3], 4
      %s26 = int_to_ptr.vmem [resolvable:$true] %s25
      %31 = dma.hbm_to_vmem [thread:$0]  %s3, 4096, %s26, [#allocation4], 128, 128, 8
    $region17: #{tpu_custom_call.1} parent=1 // pred_fallthru
      _
    // Predicated region
    $region18: #{tpu_custom_call.1} parent=1 // pred_check
      _
    $region19: #{tpu_custom_call.1} parent=1 // pred_check_branch
      %33 = sbr.rel (0) target = $region21
    $region20: #{tpu_custom_call.1} parent=1 // pred_region
      _
    $region21: #{tpu_custom_call.1} parent=1 // pred_fallthru
      _
    // Predicated region
    $region22: #{tpu_custom_call.1} parent=1 // pred_check
      _
    $region23: #{tpu_custom_call.1} parent=1 // pred_check_branch
      %35 = sbr.rel (0) target = $region25
    $region24: #{tpu_custom_call.1} parent=1 // pred_region
      _
    $region25: #{tpu_custom_call.1} parent=1 // pred_fallthru
      _
    // Predicated region
    $region26: #{tpu_custom_call.1} parent=1 // pred_check
      _
    $region27: #{tpu_custom_call.1} parent=1 // pred_check_branch
      %37 = sbr.rel (0) target = $region29
    $region28: #{tpu_custom_call.1} parent=1 // pred_region
      _
    $region29: #{tpu_custom_call.1} parent=1 // pred_fallthru
      _
    // Predicated region
    $region30: #{tpu_custom_call.1} parent=1 // pred_check
      _
    $region31: #{tpu_custom_call.1} parent=1 // pred_check_branch
      %39 = sbr.rel (0) target = $region33
    $region32: #{tpu_custom_call.1} parent=1 // pred_region
      %40 = dma.done [#allocation4], 4096
    $region33: #{tpu_custom_call.1} parent=1 // pred_fallthru
      _
    %v42 = vld [vmem:[%s0] sm:$0xff]
    %v43 = vld [vmem:[%s0 + $0x8] sm:$0xff]
    %v44 = vld [vmem:[%s0 + $0x10] sm:$0xff]
    %v45 = vld [vmem:[%s0 + $0x18] sm:$0xff]
    %v46 = vld [vmem:[%s0 + $0x20] sm:$0xff]
    %v47 = vld [vmem:[%s0 + $0x28] sm:$0xff]
    %v48 = vld [vmem:[%s0 + $0x30] sm:$0xff]
    %v49 = vld [vmem:[%s0 + $0x38] sm:$0xff]
    %v50 = vpack.c.bf16 %v43, %v42
    %v51 = vpack.c.bf16 %v45, %v44
    %v52 = vpack.c.bf16 %v47, %v46
    %v53 = vpack.c.bf16 %v49, %v48
    %v54 = vld [vmem:[%s1] sm:$0xff]
    %v55 = vld [vmem:[%s1 + $0x8] sm:$0x77]
    %v56 = vld [vmem:[%s2] sm:$0x3]
    %v58 = vlaneseq
    %v59 = vshrl.u32 %v58, 7
    %v60 = vsub.s32 0, %v59
    %v61 = vrot.slane %v56, %v60
    %v62 = vlaneseq
    %v63 = vshrl.u32 %v62, 7
    %v64 = vsub.s32 1, %v63
    %v65 = vrot.slane %v56, %v64
    %v70 = vunpack.c.l.b16 %v54
    %v71 = vunpack.c.h.b16 %v54
    %v72 = vunpack.c.l.b16 %v55
    %v73 = vunpack.c.h.b16 %v55
    %v74 = vpack.c.b16 %v72, %v70
    %v75 = vpack.c.b16 %v73, %v71
    %vm76 = vcmask 105472
    %v78 = vsel %vm76, %v50, 0
    %v81 = vsel %vm76, %v51, 0
    %v84 = vsel %vm76, %v52, 0
    %v87 = vsel %vm76, %v53, 0
    %vm89 = vcmask 1045504
    %vm90 = vcmask 1046528
    %v91 = vsel %vm89, 4294967295, 65535
    %v92 = vsel %vm90, %v91, 0
    %v94 = vand.u32 %v74, %v92
    %v97 = vand.u32 %v75, %v92
    %99 = vmatprep.subr.bf16.mxu0 %v97
    %100 = vmatpush1.bf16.msra.mxu0 %v94
    %101 = vmatprep.subr.bf16.mxu0 0
    %102 = vmatpush1.bf16.msra.mxu0 0
    %103 = vmatprep.subr.bf16.mxu0 0
    %104 = vmatpush1.bf16.msra.mxu0 0
    %105 = vmatprep.subr.bf16.mxu0 0
    %106 = vmatpush1.bf16.msra.mxu0 0
    %107 = vmatprep.subr.bf16.mxu0 0
    %108 = vmatpush1.bf16.msra.mxu0 0
    %109 = vmatprep.subr.bf16.mxu0 0
    %110 = vmatpush1.bf16.msra.mxu0 0
    %111 = vmatprep.subr.bf16.mxu0 0
    %112 = vmatpush1.bf16.msra.mxu0 0
    %113 = vmatprep.subr.bf16.mxu0 0
    %114 = vmatpush1.bf16.msra.mxu0 0
    %115 = vmatprep.subr.bf16.mxu0 0
    %116 = vmatpush1.bf16.msra.mxu0 0
    %117 = vmatprep.subr.bf16.mxu0 0
    %118 = vmatpush1.bf16.msra.mxu0 0
    %119 = vmatprep.subr.bf16.mxu0 0
    %120 = vmatpush1.bf16.msra.mxu0 0
    %121 = vmatprep.subr.bf16.mxu0 0
    %122 = vmatpush1.bf16.msra.mxu0 0
    %123 = vmatprep.subr.bf16.mxu0 0
    %124 = vmatpush1.bf16.msra.mxu0 0
    %125 = vmatprep.subr.bf16.mxu0 0
    %126 = vmatpush1.bf16.msra.mxu0 0
    %127 = vmatprep.subr.bf16.mxu0 0
    %128 = vmatpush1.bf16.msra.mxu0 0
    %129 = vmatprep.subr.bf16.mxu0 0
    %130 = vmatpush1.bf16.msra.mxu0 0
    %131 = vmatprep.mubr.bf16.mxu0 0
    %132 = vmatmul.mubr.bf16.gmra.mrb[0].mxu0 %v78
    %v133 = vpop.f32.mrb[0].mxu0
    %v134 = vadd.f32 %v61, %v133
    %v135 = vpop.f32.mrb[0].mxu0
    %v136 = vadd.f32 %v65, %v135
    %v137 = vpop.f32.mrb[0].mxu0
    %v138 = vadd.f32 %v61, %v137
    %v139 = vpop.f32.mrb[0].mxu0
    %v140 = vadd.f32 %v65, %v139
    %141 = vmatprep.mubr.bf16.mxu0 0
    %142 = vmatmul.mubr.bf16.gmra.mrb[0].mxu0 %v81
    %v143 = vpop.f32.mrb[0].mxu0
    %v144 = vadd.f32 %v61, %v143
    %v145 = vpop.f32.mrb[0].mxu0
    %v146 = vadd.f32 %v65, %v145
    %v147 = vpop.f32.mrb[0].mxu0
    %v148 = vadd.f32 %v61, %v147
    %v149 = vpop.f32.mrb[0].mxu0
    %v150 = vadd.f32 %v65, %v149
    %151 = vmatprep.mubr.bf16.mxu0 0
    %152 = vmatmul.mubr.bf16.gmra.mrb[0].mxu0 %v84
    %v153 = vpop.f32.mrb[0].mxu0
    %v154 = vadd.f32 %v61, %v153
    %v155 = vpop.f32.mrb[0].mxu0
    %v156 = vadd.f32 %v65, %v155
    %v157 = vpop.f32.mrb[0].mxu0
    %v158 = vadd.f32 %v61, %v157
    %v159 = vpop.f32.mrb[0].mxu0
    %v160 = vadd.f32 %v65, %v159
    %161 = vmatprep.mubr.bf16.mxu0 0
    %162 = vmatmul.mubr.bf16.gmra.mrb[0].mxu0 %v87
    %v163 = vpop.f32.mrb[0].mxu0
    %v164 = vadd.f32 %v61, %v163
    %v165 = vpop.f32.mrb[0].mxu0
    %v166 = vadd.f32 %v65, %v165
    %v167 = vpop.f32.mrb[0].mxu0
    %v168 = vadd.f32 %v61, %v167
    %v169 = vpop.f32.mrb[0].mxu0
    %v170 = vadd.f32 %v65, %v169
    %171 = vdwg.mxu0
    %v172 = vmax.f32 %v134, 0.0
    %v173 = vmax.f32 %v136, 0.0
    %v174 = vmax.f32 %v138, 0.0
    %v175 = vmax.f32 %v140, 0.0
    %v176 = vmax.f32 %v144, 0.0
    %v177 = vmax.f32 %v146, 0.0
    %v178 = vmax.f32 %v148, 0.0
    %v179 = vmax.f32 %v150, 0.0
    %v180 = vmax.f32 %v154, 0.0
    %v181 = vmax.f32 %v156, 0.0
    %v182 = vmax.f32 %v158, 0.0
    %v183 = vmax.f32 %v160, 0.0
    %v184 = vmax.f32 %v164, 0.0
    %v185 = vmax.f32 %v166, 0.0
    %v186 = vmax.f32 %v168, 0.0
    %v187 = vmax.f32 %v170, 0.0
    %v188 = vpack.c.bf16 %v174, %v172
    %v189 = vpack.c.bf16 %v175, %v173
    %v190 = vpack.c.bf16 %v178, %v176
    %v191 = vpack.c.bf16 %v179, %v177
    %v192 = vpack.c.bf16 %v182, %v180
    %v193 = vpack.c.bf16 %v183, %v181
    %v194 = vpack.c.bf16 %v186, %v184
    %v195 = vpack.c.bf16 %v187, %v185
    %v196 = vld [vmem:[#allocation3] sm:$0xff]
    %v197 = vld [vmem:[#allocation3 + $0x8] sm:$0xff]
    %v198 = vld [vmem:[#allocation3 + $0x10] sm:$0xff]
    %v199 = vld [vmem:[#allocation3 + $0x18] sm:$0xff]
    %v200 = vld [vmem:[#allocation3 + $0x20] sm:$0xff]
    %v201 = vld [vmem:[#allocation3 + $0x28] sm:$0xff]
    %v202 = vld [vmem:[#allocation3 + $0x30] sm:$0xff]
    %v203 = vld [vmem:[#allocation3 + $0x38] sm:$0xff]
    %v204 = vld [vmem:[#allocation3 + $0x40] sm:$0xff]
    %v205 = vld [vmem:[#allocation3 + $0x48] sm:$0xff]
    %v206 = vld [vmem:[#allocation3 + $0x50] sm:$0xff]
    %v207 = vld [vmem:[#allocation3 + $0x58] sm:$0xff]
    %v208 = vld [vmem:[#allocation3 + $0x60] sm:$0xff]
    %v209 = vld [vmem:[#allocation3 + $0x68] sm:$0xff]
    %v210 = vld [vmem:[#allocation3 + $0x70] sm:$0xff]
    %v211 = vld [vmem:[#allocation3 + $0x78] sm:$0xff]
    %v212 = vld [vmem:[#allocation3 + $0x80] sm:$0xff]
    %v213 = vld [vmem:[#allocation3 + $0x88] sm:$0xff]
    %v214 = vld [vmem:[#allocation3 + $0x90] sm:$0xff]
    %v215 = vld [vmem:[#allocation3 + $0x98] sm:$0xff]
    %v216 = vld [vmem:[#allocation3 + $0xa0] sm:$0xff]
    %v217 = vld [vmem:[#allocation3 + $0xa8] sm:$0xff]
    %v218 = vld [vmem:[#allocation3 + $0xb0] sm:$0xff]
    %v219 = vld [vmem:[#allocation3 + $0xb8] sm:$0xff]
    %v220 = vld [vmem:[#allocation3 + $0xc0] sm:$0xff]
    %v221 = vld [vmem:[#allocation3 + $0xc8] sm:$0xff]
    %v222 = vld [vmem:[#allocation3 + $0xd0] sm:$0xff]
    %v223 = vld [vmem:[#allocation3 + $0xd8] sm:$0xff]
    %v224 = vld [vmem:[#allocation3 + $0xe0] sm:$0xff]
    %v225 = vld [vmem:[#allocation3 + $0xe8] sm:$0xff]
    %v226 = vld [vmem:[#allocation3 + $0xf0] sm:$0xff]
    %v227 = vld [vmem:[#allocation3 + $0xf8] sm:$0xff]
    %v228 = vld [vmem:[%s4] sm:$0x3]
    %v230 = vlaneseq
    %v231 = vshrl.u32 %v230, 7
    %v232 = vsub.s32 0, %v231
    %v233 = vrot.slane %v228, %v232
    %v234 = vlaneseq
    %v235 = vshrl.u32 %v234, 7
    %v236 = vsub.s32 1, %v235
    %v237 = vrot.slane %v228, %v236
    %v272 = vunpack.c.l.b16 %v196
    %v273 = vunpack.c.h.b16 %v196
    %v274 = vunpack.c.l.b16 %v197
    %v275 = vunpack.c.h.b16 %v197
    %v276 = vunpack.c.l.b16 %v198
    %v277 = vunpack.c.h.b16 %v198
    %v278 = vunpack.c.l.b16 %v199
    %v279 = vunpack.c.h.b16 %v199
    %v280 = vunpack.c.l.b16 %v200
    %v281 = vunpack.c.h.b16 %v200
    %v282 = vunpack.c.l.b16 %v201
    %v283 = vunpack.c.h.b16 %v201
    %v284 = vunpack.c.l.b16 %v202
    %v285 = vunpack.c.h.b16 %v202
    %v286 = vunpack.c.l.b16 %v203
    %v287 = vunpack.c.h.b16 %v203
    %v288 = vunpack.c.l.b16 %v204
    %v289 = vunpack.c.h.b16 %v204
    %v290 = vunpack.c.l.b16 %v205
    %v291 = vunpack.c.h.b16 %v205
    %v292 = vunpack.c.l.b16 %v206
    %v293 = vunpack.c.h.b16 %v206
    %v294 = vunpack.c.l.b16 %v207
    %v295 = vunpack.c.h.b16 %v207
    %v296 = vunpack.c.l.b16 %v208
    %v297 = vunpack.c.h.b16 %v208
    %v298 = vunpack.c.l.b16 %v209
    %v299 = vunpack.c.h.b16 %v209
    %v300 = vunpack.c.l.b16 %v210
    %v301 = vunpack.c.h.b16 %v210
    %v302 = vunpack.c.l.b16 %v211
    %v303 = vunpack.c.h.b16 %v211
    %v304 = vunpack.c.l.b16 %v212
    %v305 = vunpack.c.h.b16 %v212
    %v306 = vunpack.c.l.b16 %v213
    %v307 = vunpack.c.h.b16 %v213
    %v308 = vunpack.c.l.b16 %v214
    %v309 = vunpack.c.h.b16 %v214
    %v310 = vunpack.c.l.b16 %v215
    %v311 = vunpack.c.h.b16 %v215
    %v312 = vunpack.c.l.b16 %v216
    %v313 = vunpack.c.h.b16 %v216
    %v314 = vunpack.c.l.b16 %v217
    %v315 = vunpack.c.h.b16 %v217
    %v316 = vunpack.c.l.b16 %v218
    %v317 = vunpack.c.h.b16 %v218
    %v318 = vunpack.c.l.b16 %v219
    %v319 = vunpack.c.h.b16 %v219
    %v320 = vunpack.c.l.b16 %v220
    %v321 = vunpack.c.h.b16 %v220
    %v322 = vunpack.c.l.b16 %v221
    %v323 = vunpack.c.h.b16 %v221
    %v324 = vunpack.c.l.b16 %v222
    %v325 = vunpack.c.h.b16 %v222
    %v326 = vunpack.c.l.b16 %v223
    %v327 = vunpack.c.h.b16 %v223
    %v328 = vunpack.c.l.b16 %v224
    %v329 = vunpack.c.h.b16 %v224
    %v330 = vunpack.c.l.b16 %v225
    %v331 = vunpack.c.h.b16 %v225
    %v332 = vunpack.c.l.b16 %v226
    %v333 = vunpack.c.h.b16 %v226
    %v334 = vunpack.c.l.b16 %v227
    %v335 = vunpack.c.h.b16 %v227
    %v336 = vpack.c.b16 %v274, %v272
    %v337 = vpack.c.b16 %v275, %v273
    %v338 = vpack.c.b16 %v278, %v276
    %v339 = vpack.c.b16 %v279, %v277
    %v340 = vpack.c.b16 %v282, %v280
    %v341 = vpack.c.b16 %v283, %v281
    %v342 = vpack.c.b16 %v286, %v284
    %v343 = vpack.c.b16 %v287, %v285
    %v344 = vpack.c.b16 %v290, %v288
    %v345 = vpack.c.b16 %v291, %v289
    %v346 = vpack.c.b16 %v294, %v292
    %v347 = vpack.c.b16 %v295, %v293
    %v348 = vpack.c.b16 %v298, %v296
    %v349 = vpack.c.b16 %v299, %v297
    %v350 = vpack.c.b16 %v302, %v300
    %v351 = vpack.c.b16 %v303, %v301
    %v352 = vpack.c.b16 %v306, %v304
    %v353 = vpack.c.b16 %v307, %v305
    %v354 = vpack.c.b16 %v310, %v308
    %v355 = vpack.c.b16 %v311, %v309
    %v356 = vpack.c.b16 %v314, %v312
    %v357 = vpack.c.b16 %v315, %v313
    %v358 = vpack.c.b16 %v318, %v316
    %v359 = vpack.c.b16 %v319, %v317
    %v360 = vpack.c.b16 %v322, %v320
    %v361 = vpack.c.b16 %v323, %v321
    %v362 = vpack.c.b16 %v326, %v324
    %v363 = vpack.c.b16 %v327, %v325
    %v364 = vpack.c.b16 %v330, %v328
    %v365 = vpack.c.b16 %v331, %v329
    %v366 = vpack.c.b16 %v334, %v332
    %v367 = vpack.c.b16 %v335, %v333
    %400 = vmatprep.subr.bf16.mxu0 %v337
    %401 = vmatpush1.bf16.msra.mxu0 %v336
    %402 = vmatprep.subr.bf16.mxu0 %v339
    %403 = vmatpush1.bf16.msra.mxu0 %v338
    %404 = vmatprep.subr.bf16.mxu0 %v341
    %405 = vmatpush1.bf16.msra.mxu0 %v340
    %406 = vmatprep.subr.bf16.mxu0 %v343
    %407 = vmatpush1.bf16.msra.mxu0 %v342
    %408 = vmatprep.subr.bf16.mxu0 %v345
    %409 = vmatpush1.bf16.msra.mxu0 %v344
    %410 = vmatprep.subr.bf16.mxu0 %v347
    %411 = vmatpush1.bf16.msra.mxu0 %v346
    %412 = vmatprep.subr.bf16.mxu0 %v349
    %413 = vmatpush1.bf16.msra.mxu0 %v348
    %414 = vmatprep.subr.bf16.mxu0 %v351
    %415 = vmatpush1.bf16.msra.mxu0 %v350
    %416 = vmatprep.subr.bf16.mxu0 %v353
    %417 = vmatpush1.bf16.msra.mxu0 %v352
    %418 = vmatprep.subr.bf16.mxu0 %v355
    %419 = vmatpush1.bf16.msra.mxu0 %v354
    %420 = vmatprep.subr.bf16.mxu0 %v357
    %421 = vmatpush1.bf16.msra.mxu0 %v356
    %422 = vmatprep.subr.bf16.mxu0 %v359
    %423 = vmatpush1.bf16.msra.mxu0 %v358
    %424 = vmatprep.subr.bf16.mxu0 %v361
    %425 = vmatpush1.bf16.msra.mxu0 %v360
    %426 = vmatprep.subr.bf16.mxu0 %v363
    %427 = vmatpush1.bf16.msra.mxu0 %v362
    %428 = vmatprep.subr.bf16.mxu0 %v365
    %429 = vmatpush1.bf16.msra.mxu0 %v364
    %430 = vmatprep.subr.bf16.mxu0 %v367
    %431 = vmatpush1.bf16.msra.mxu0 %v366
    %432 = vmatprep.mubr.bf16.mxu0 %v189
    %433 = vmatmul.mubr.bf16.gmra.mrb[0].mxu0 %v188
    %v434 = vpop.f32.mrb[0].mxu0
    %v435 = vadd.f32 %v233, %v434
    %v436 = vpop.f32.mrb[0].mxu0
    %v437 = vadd.f32 %v237, %v436
    %v438 = vpop.f32.mrb[0].mxu0
    %v439 = vadd.f32 %v233, %v438
    %v440 = vpop.f32.mrb[0].mxu0
    %v441 = vadd.f32 %v237, %v440
    %442 = vmatprep.mubr.bf16.mxu0 %v191
    %443 = vmatmul.mubr.bf16.gmra.mrb[0].mxu0 %v190
    %v444 = vpop.f32.mrb[0].mxu0
    %v445 = vadd.f32 %v233, %v444
    %v446 = vpop.f32.mrb[0].mxu0
    %v447 = vadd.f32 %v237, %v446
    %v448 = vpop.f32.mrb[0].mxu0
    %v449 = vadd.f32 %v233, %v448
    %v450 = vpop.f32.mrb[0].mxu0
    %v451 = vadd.f32 %v237, %v450
    %452 = vmatprep.mubr.bf16.mxu0 %v193
    %453 = vmatmul.mubr.bf16.gmra.mrb[0].mxu0 %v192
    %v454 = vpop.f32.mrb[0].mxu0
    %v455 = vadd.f32 %v233, %v454
    %v456 = vpop.f32.mrb[0].mxu0
    %v457 = vadd.f32 %v237, %v456
    %v458 = vpop.f32.mrb[0].mxu0
    %v459 = vadd.f32 %v233, %v458
    %v460 = vpop.f32.mrb[0].mxu0
    %v461 = vadd.f32 %v237, %v460
    %462 = vmatprep.mubr.bf16.mxu0 %v195
    %463 = vmatmul.mubr.bf16.gmra.mrb[0].mxu0 %v194
    %v464 = vpop.f32.mrb[0].mxu0
    %v465 = vadd.f32 %v233, %v464
    %v466 = vpop.f32.mrb[0].mxu0
    %v467 = vadd.f32 %v237, %v466
    %v468 = vpop.f32.mrb[0].mxu0
    %v469 = vadd.f32 %v233, %v468
    %v470 = vpop.f32.mrb[0].mxu0
    %v471 = vadd.f32 %v237, %v470
    %472 = vdwg.mxu0
    %v473 = vmax.f32 %v435, 0.0
    %v474 = vmax.f32 %v437, 0.0
    %v475 = vmax.f32 %v439, 0.0
    %v476 = vmax.f32 %v441, 0.0
    %v477 = vmax.f32 %v445, 0.0
    %v478 = vmax.f32 %v447, 0.0
    %v479 = vmax.f32 %v449, 0.0
    %v480 = vmax.f32 %v451, 0.0
    %v481 = vmax.f32 %v455, 0.0
    %v482 = vmax.f32 %v457, 0.0
    %v483 = vmax.f32 %v459, 0.0
    %v484 = vmax.f32 %v461, 0.0
    %v485 = vmax.f32 %v465, 0.0
    %v486 = vmax.f32 %v467, 0.0
    %v487 = vmax.f32 %v469, 0.0
    %v488 = vmax.f32 %v471, 0.0
    %v489 = vld [vmem:[%s5] sm:$0x3]
    %v491 = vlaneseq
    %v492 = vshrl.u32 %v491, 7
    %v493 = vsub.s32 0, %v492
    %v494 = vrot.slane %v489, %v493
    %v495 = vlaneseq
    %v496 = vshrl.u32 %v495, 7
    %v497 = vsub.s32 1, %v496
    %v498 = vrot.slane %v489, %v497
    %v501 = vmul.f32 %v473, %v494
    %v502 = vmul.f32 %v474, %v498
    %v503 = vmul.f32 %v475, %v494
    %v504 = vmul.f32 %v476, %v498
    %v505 = vmul.f32 %v477, %v494
    %v506 = vmul.f32 %v478, %v498
    %v507 = vmul.f32 %v479, %v494
    %v508 = vmul.f32 %v480, %v498
    %v509 = vmul.f32 %v481, %v494
    %v510 = vmul.f32 %v482, %v498
    %v511 = vmul.f32 %v483, %v494
    %v512 = vmul.f32 %v484, %v498
    %v513 = vmul.f32 %v485, %v494
    %v514 = vmul.f32 %v486, %v498
    %v515 = vmul.f32 %v487, %v494
    %v516 = vmul.f32 %v488, %v498
    %v517 = vadd.f32 %v501, %v502
    %v518 = vadd.f32 %v503, %v504
    %v519 = vadd.f32 %v505, %v506
    %v520 = vadd.f32 %v507, %v508
    %v521 = vadd.f32 %v509, %v510
    %v522 = vadd.f32 %v511, %v512
    %v523 = vadd.f32 %v513, %v514
    %v524 = vadd.f32 %v515, %v516
    %525 = vadd.xlane.f32.xlu0 %v517
    %v526 = vpop.xlane.xlu0 %525
    %527 = vadd.xlane.f32.xlu0 %v518
    %v528 = vpop.xlane.xlu0 %527
    %529 = vadd.xlane.f32.xlu0 %v519
    %v530 = vpop.xlane.xlu0 %529
    %531 = vadd.xlane.f32.xlu0 %v520
    %v532 = vpop.xlane.xlu0 %531
    %533 = vadd.xlane.f32.xlu0 %v521
    %v534 = vpop.xlane.xlu0 %533
    %535 = vadd.xlane.f32.xlu0 %v522
    %v536 = vpop.xlane.xlu0 %535
    %537 = vadd.xlane.f32.xlu0 %v523
    %v538 = vpop.xlane.xlu0 %537
    %539 = vadd.xlane.f32.xlu0 %v524
    %v540 = vpop.xlane.xlu0 %539
    %s541 = sld [smem:[#allocation2]]
    %v542 = vstv %s541
    %v543 = vadd.f32 %v526, %v542
    %v544 = vadd.f32 %v528, %v542
    %v545 = vadd.f32 %v530, %v542
    %v546 = vadd.f32 %v532, %v542
    %v547 = vadd.f32 %v534, %v542
    %v548 = vadd.f32 %v536, %v542
    %v549 = vadd.f32 %v538, %v542
    %v550 = vadd.f32 %v540, %v542
    %v551 = vtanh.pop %v543
    %v552 = vtanh.pop %v544
    %v553 = vtanh.pop %v545
    %v554 = vtanh.pop %v546
    %v555 = vtanh.pop %v547
    %v556 = vtanh.pop %v548
    %v557 = vtanh.pop %v549
    %v558 = vtanh.pop %v550
    %v559 = vmul.f32 %v551, 0.15
    %v560 = vmul.f32 %v552, 0.15
    %v561 = vmul.f32 %v553, 0.15
    %v562 = vmul.f32 %v554, 0.15
    %v563 = vmul.f32 %v555, 0.15
    %v564 = vmul.f32 %v556, 0.15
    %v565 = vmul.f32 %v557, 0.15
    %v566 = vmul.f32 %v558, 0.15
    %v567 = vadd.f32 %v559, 0.0
    %v568 = vadd.f32 %v560, 0.0
    %v569 = vadd.f32 %v561, 0.0
    %v570 = vadd.f32 %v562, 0.0
    %v571 = vadd.f32 %v563, 0.0
    %v572 = vadd.f32 %v564, 0.0
    %v573 = vadd.f32 %v565, 0.0
    %v574 = vadd.f32 %v566, 0.0
    %vm575 = vcmask 7168
    %576 = vst.msk [vmem:[%s7] sm:$0xff] %vm575, %v567
    %577 = vst.msk [vmem:[%s7 + $0x8] sm:$0xff] %vm575, %v568
    %578 = vst.msk [vmem:[%s7 + $0x10] sm:$0xff] %vm575, %v569
    %579 = vst.msk [vmem:[%s7 + $0x18] sm:$0xff] %vm575, %v570
    %580 = vst.msk [vmem:[%s7 + $0x20] sm:$0xff] %vm575, %v571
    %581 = vst.msk [vmem:[%s7 + $0x28] sm:$0xff] %vm575, %v572
    %582 = vst.msk [vmem:[%s7 + $0x30] sm:$0xff] %vm575, %v573
    %583 = vst.msk [vmem:[%s7 + $0x38] sm:$0xff] %vm575, %v574
    // Predicated region
    $region34: #{tpu_custom_call.1} parent=1 // pred_check
      _
    $region35: #{tpu_custom_call.1} parent=1 // pred_check_branch
      %585 = sbr.rel (0) target = $region37
    $region36: #{tpu_custom_call.1} parent=1 // pred_region
      _
    $region37: #{tpu_custom_call.1} parent=1 // pred_fallthru
      _
    // Predicated region
    $region38: #{tpu_custom_call.1} parent=1 // pred_check
      _
    $region39: #{tpu_custom_call.1} parent=1 // pred_check_branch
      %587 = sbr.rel (0) target = $region41
    $region40: #{tpu_custom_call.1} parent=1 // pred_region
      _
    $region41: #{tpu_custom_call.1} parent=1 // pred_fallthru
      _
    %588 = vsyncpa [#allocation4], 1

</llo_original>
